<compile_context>
chip_gen: v7x
topology: tpu7x:2x2x1
jax: 0.10.0
libtpu: 0.0.40
codegen_flags: <defaults>
</compile_context>

<pallas_src>
import functools

import jax
import jax.numpy as jnp
from jax.experimental import pallas as pl
from jax.experimental.pallas import tpu as pltpu


def _round_up(n, m):
    return ((n + m - 1) // m) * m


def _softplus(z):
    # PyTorch F.softplus default: beta=1, threshold=20 -> linear above threshold.
    return jnp.where(z > 20.0, z, jnp.log1p(jnp.exp(jnp.minimum(z, 20.0))))


def _bn_over_batch(h, gamma, beta, inv_b, eps=1e-5):
    """BatchNorm1d training-mode forward, batch on the sublane (first) axis.

    Single-pass statistics: one sweep computes sum and sum-of-squares, then
    var = E[h^2] - mean^2 (clamped at 0 against cancellation).  Scale/shift are
    folded into (1, F) vectors so the (B, F) tile sees exactly one mul + one add.
    Biased variance, eps=1e-5, matching PyTorch's in-training normalization.
    """
    s = jnp.sum(h, axis=0, keepdims=True)           # (1, F)
    sq = jnp.sum(h * h, axis=0, keepdims=True)      # (1, F)
    mean = s * inv_b
    var = jnp.maximum(sq * inv_b - mean * mean, 0.0)
    inv = jax.lax.rsqrt(var + eps)                  # EUP
    scale = inv * gamma                             # (1, F)
    shift = beta - mean * scale                     # (1, F)
    return h * scale + shift


def dnn_poisson_kernel(x_ref, wpack_ref, vpack_ref, o_ref, *,
                       input_dim, nb_units, output_dim, batch):
    x = x_ref[...]                                   # (B, input_dim), no padding
    inv_b = 1.0 / float(batch)

    # 8-sublane-aligned row offsets of the packed (pre-transposed) weights.
    r0 = _round_up(input_dim, 8)
    r1 = r0 + _round_up(nb_units, 8)
    w0T = wpack_ref[0:input_dim, :]                  # (input_dim, nb_units)
    w1T = wpack_ref[r0:r0 + nb_units, :]             # (nb_units, nb_units)
    w2T = wpack_ref[r1:r1 + nb_units, 0:output_dim]  # (nb_units, output_dim)

    b0 = vpack_ref[0:1, :]
    g0 = vpack_ref[1:2, :]
    be0 = vpack_ref[2:3, :]
    b1 = vpack_ref[3:4, :]
    g1 = vpack_ref[4:5, :]
    be1 = vpack_ref[5:6, :]
    b2 = vpack_ref[6:7, 0:output_dim]

    # ----- layer 0: Linear -> ReLU -> BatchNorm1d (batch statistics) -----
    h = jnp.dot(x, w0T, preferred_element_type=jnp.float32) + b0
    h = jnp.maximum(h, 0.0)
    h = _bn_over_batch(h, g0, be0, inv_b)

    # ----- layer 1: Linear -> ReLU -> BatchNorm1d (batch statistics) -----
    h = jnp.dot(h, w1T, preferred_element_type=jnp.float32) + b1
    h = jnp.maximum(h, 0.0)
    h = _bn_over_batch(h, g1, be1, inv_b)

    # ----- final layer: Linear -> Softplus -----
    z = jnp.dot(h, w2T, preferred_element_type=jnp.float32) + b2
    o_ref[...] = _softplus(z).astype(o_ref.dtype)


def pack_params(params, *, input_dim, nb_units, output_dim):
    """Pack the 10 small parameter tensors into 2 contiguous buffers.

    Pure function of the parameters -> call ONCE and reuse across forwards.
    Weights are stored pre-transposed (in_features, out_features), each block
    starting at an 8-sublane-aligned row.
    """
    r0 = _round_up(input_dim, 8)
    r1 = r0 + _round_up(nb_units, 8)
    rows = r1 + _round_up(nb_units, 8)

    wpack = jnp.zeros((rows, nb_units), jnp.float32)
    wpack = wpack.at[0:input_dim, :].set(params["w0"].T)              # (in, units)
    wpack = wpack.at[r0:r0 + nb_units, :].set(params["w1"].T)         # (units, units)
    wpack = wpack.at[r1:r1 + nb_units, 0:output_dim].set(params["w2"].T)

    # Per-feature row vectors (broadcast over the batch/sublane axis):
    # [b0, g0, be0, b1, g1, be1, b2(pad), 0].
    vpack = jnp.zeros((8, nb_units), jnp.float32)
    vpack = vpack.at[0, :].set(params["b0"])
    vpack = vpack.at[1, :].set(params["g0"])
    vpack = vpack.at[2, :].set(params["be0"])
    vpack = vpack.at[3, :].set(params["b1"])
    vpack = vpack.at[4, :].set(params["g1"])
    vpack = vpack.at[5, :].set(params["be1"])
    vpack = vpack.at[6, 0:output_dim].set(params["b2"])
    return wpack, vpack


@functools.partial(jax.jit, static_argnames=("input_dim", "nb_units", "output_dim"))
def dnn_poisson_forward(x, wpack, vpack, *, input_dim, nb_units, output_dim):
    """x: (B, input_dim) float32.  wpack/vpack: output of pack_params (hoisted)."""
    B = x.shape[0]

    flops = 2 * B * (input_dim * nb_units + nb_units * nb_units + nb_units * output_dim)
    transcendentals = 2 * B * output_dim + 4 * nb_units  # softplus exp/log1p + BN rsqrt
    bytes_accessed = 4 * (x.size + wpack.size + vpack.size + B * output_dim)

    # v5e's 16 MiB default scoped VMEM is the tightest across v5e/v6e/v7x; only
    # raise the limit when the (double-buffered) working set would exceed it.
    vmem_needed = 2 * 4 * (x.size + wpack.size + vpack.size + B * output_dim) \
        + 4 * 4 * B * nb_units
    compiler_params = None
    if vmem_needed > (16 << 20):
        compiler_params = pltpu.CompilerParams(
            vmem_limit_bytes=min(vmem_needed + (4 << 20), 100 << 20))

    vmem = pl.BlockSpec(memory_space=pltpu.MemorySpace.VMEM)
    kernel = functools.partial(
        dnn_poisson_kernel,
        input_dim=input_dim, nb_units=nb_units, output_dim=output_dim, batch=B,
    )
    return pl.pallas_call(
        kernel,
        out_shape=jax.ShapeDtypeStruct((B, output_dim), jnp.float32),
        in_specs=[vmem, vmem, vmem],
        out_specs=vmem,
        cost_estimate=pl.CostEstimate(
            flops=flops,
            transcendentals=transcendentals,
            bytes_accessed=bytes_accessed,
        ),
        compiler_params=compiler_params,
    )(x, wpack, vpack)


def init_params(key, nb_units=32, input_dim=18, output_dim=1):
    """Deterministic synthetic init (nb_layers=3): fc0, bn0, fc1, bn1, fc2.

    Weights kept in PyTorch layout (out_features, in_features)."""
    k0, k1, k2, k3, k4, k5 = jax.random.split(key, 6)

    def lin(kw_, kb, fan_in, fan_out):
        bound = 1.0 / jnp.sqrt(jnp.float32(fan_in))
        w = jax.random.uniform(kw_, (fan_out, fan_in), jnp.float32, -bound, bound)
        b = jax.random.uniform(kb, (fan_out,), jnp.float32, -bound, bound)
        return w, b

    w0, b0 = lin(k0, k1, input_dim, nb_units)
    w1, b1 = lin(k2, k3, nb_units, nb_units)
    w2, b2 = lin(k4, k5, nb_units, output_dim)
    return dict(
        w0=w0, b0=b0,
        g0=jnp.ones((nb_units,), jnp.float32), be0=jnp.zeros((nb_units,), jnp.float32),
        w1=w1, b1=b1,
        g1=jnp.ones((nb_units,), jnp.float32), be1=jnp.zeros((nb_units,), jnp.float32),
        w2=w2, b2=b2,
    )


def reference_forward(x, p):
    """Pure-JAX reference in the standard (B, F) layout (two-pass BN)."""
    def bn(h, g, b, eps=1e-5):
        m = jnp.mean(h, axis=0, keepdims=True)
        v = jnp.mean((h - m) ** 2, axis=0, keepdims=True)
        return (h - m) / jnp.sqrt(v + eps) * g + b

    h = jnp.maximum(x @ p["w0"].T + p["b0"], 0.0)
    h = bn(h, p["g0"], p["be0"])
    h = jnp.maximum(h @ p["w1"].T + p["b1"], 0.0)
    h = bn(h, p["g1"], p["be1"])
    z = h @ p["w2"].T + p["b2"]
    return jnp.where(z > 20.0, z, jnp.log1p(jnp.exp(jnp.minimum(z, 20.0))))


if __name__ == "__main__":
    # Shapes consistent with the module defaults: nb_layers=3, nb_units=32,
    # input_dim=18, output_dim=1, batch=8 (BatchNorm needs batch > 1).
    key = jax.random.PRNGKey(0)
    kx, kp = jax.random.split(key)

    B, INPUT_DIM, NB_UNITS, OUTPUT_DIM = 8, 18, 32, 1
    x = jax.random.normal(kx, (B, INPUT_DIM), jnp.float32)
    params = init_params(kp, nb_units=NB_UNITS, input_dim=INPUT_DIM, output_dim=OUTPUT_DIM)

    # Hoisted out of the forward path: packed once, reused for every call.
    wpack, vpack = pack_params(
        params, input_dim=INPUT_DIM, nb_units=NB_UNITS, output_dim=OUTPUT_DIM)

    out = dnn_poisson_forward(
        x, wpack, vpack, input_dim=INPUT_DIM, nb_units=NB_UNITS, output_dim=OUTPUT_DIM)
    out = jax.block_until_ready(out)

    ref = reference_forward(x, params)
    assert out.shape == (B, OUTPUT_DIM), out.shape
    assert jnp.allclose(out, ref, atol=1e-5, rtol=1e-5), (out, ref)

    print("KERNEL_OK")
</pallas_src>

<mosaic_0001>
module attributes {stable_mosaic.version = 11 : i64} {
  func.func @dnn_poisson_kernel(%arg0: memref<8x18xf32, #tpu.memory_space<vmem>>, %arg1: memref<88x32xf32, #tpu.memory_space<vmem>>, %arg2: memref<8x32xf32, #tpu.memory_space<vmem>>, %arg3: memref<8x1xf32, #tpu.memory_space<vmem>>) attributes {dimension_semantics = [], scalar_prefetch = 0 : i64, scratch_operands = 0 : i64, tpu.core_type = #tpu.core_type<tc>} {
    %c0 = arith.constant 0 : index
    %c0_0 = arith.constant 0 : index
    %0 = vector.load %arg0[%c0, %c0_0] : memref<8x18xf32, #tpu.memory_space<vmem>>, vector<8x18xf32>
    %c0_1 = arith.constant 0 : index
    %c0_2 = arith.constant 0 : index
    %1 = vector.load %arg1[%c0_1, %c0_2] : memref<88x32xf32, #tpu.memory_space<vmem>>, vector<18x32xf32>
    %c24 = arith.constant 24 : index
    %c0_3 = arith.constant 0 : index
    %2 = vector.load %arg1[%c24, %c0_3] : memref<88x32xf32, #tpu.memory_space<vmem>>, vector<32x32xf32>
    %c56 = arith.constant 56 : index
    %c0_4 = arith.constant 0 : index
    %3 = vector.load %arg1[%c56, %c0_4] : memref<88x32xf32, #tpu.memory_space<vmem>>, vector<32x1xf32>
    %c0_5 = arith.constant 0 : index
    %c0_6 = arith.constant 0 : index
    %4 = vector.load %arg2[%c0_5, %c0_6] : memref<8x32xf32, #tpu.memory_space<vmem>>, vector<1x32xf32>
    %c1 = arith.constant 1 : index
    %c0_7 = arith.constant 0 : index
    %5 = vector.load %arg2[%c1, %c0_7] : memref<8x32xf32, #tpu.memory_space<vmem>>, vector<1x32xf32>
    %c2 = arith.constant 2 : index
    %c0_8 = arith.constant 0 : index
    %6 = vector.load %arg2[%c2, %c0_8] : memref<8x32xf32, #tpu.memory_space<vmem>>, vector<1x32xf32>
    %c3 = arith.constant 3 : index
    %c0_9 = arith.constant 0 : index
    %7 = vector.load %arg2[%c3, %c0_9] : memref<8x32xf32, #tpu.memory_space<vmem>>, vector<1x32xf32>
    %c4 = arith.constant 4 : index
    %c0_10 = arith.constant 0 : index
    %8 = vector.load %arg2[%c4, %c0_10] : memref<8x32xf32, #tpu.memory_space<vmem>>, vector<1x32xf32>
    %c5 = arith.constant 5 : index
    %c0_11 = arith.constant 0 : index
    %9 = vector.load %arg2[%c5, %c0_11] : memref<8x32xf32, #tpu.memory_space<vmem>>, vector<1x32xf32>
    %c6 = arith.constant 6 : index
    %c0_12 = arith.constant 0 : index
    %10 = vector.load %arg2[%c6, %c0_12] : memref<8x32xf32, #tpu.memory_space<vmem>>, vector<1x1xf32>
    %cst = arith.constant dense<0.000000e+00> : vector<8x32xf32>
    %11 = tpu.matmul %0, %1, %cst {dimension_numbers = #tpu.dot_dimension_numbers<[1], [0], [0], [1], [0, 0, 1, 1], [], []>} : vector<8x18xf32>, vector<18x32xf32>, vector<8x32xf32> -> vector<8x32xf32>
    %12 = vector.broadcast %4 : vector<1x32xf32> to vector<8x32xf32>
    %13 = arith.addf %11, %12 : vector<8x32xf32>
    %cst_13 = arith.constant 0.000000e+00 : f32
    %14 = vector.broadcast %cst_13 : f32 to vector<8x32xf32>
    %15 = arith.maximumf %13, %14 : vector<8x32xf32>
    %cst_14 = arith.constant dense<0.000000e+00> : vector<32xf32>
    %16 = vector.multi_reduction <add>, %15, %cst_14 [0] : vector<8x32xf32> to vector<32xf32>
    %17 = vector.shape_cast %16 : vector<32xf32> to vector<1x32xf32>
    %18 = arith.mulf %15, %15 : vector<8x32xf32>
    %cst_15 = arith.constant dense<0.000000e+00> : vector<32xf32>
    %19 = vector.multi_reduction <add>, %18, %cst_15 [0] : vector<8x32xf32> to vector<32xf32>
    %20 = vector.shape_cast %19 : vector<32xf32> to vector<1x32xf32>
    %cst_16 = arith.constant 1.250000e-01 : f32
    %21 = vector.broadcast %cst_16 : f32 to vector<1x32xf32>
    %22 = arith.mulf %17, %21 : vector<1x32xf32>
    %cst_17 = arith.constant 1.250000e-01 : f32
    %23 = vector.broadcast %cst_17 : f32 to vector<1x32xf32>
    %24 = arith.mulf %20, %23 : vector<1x32xf32>
    %25 = arith.mulf %22, %22 : vector<1x32xf32>
    %26 = arith.subf %24, %25 : vector<1x32xf32>
    %cst_18 = arith.constant 0.000000e+00 : f32
    %27 = vector.broadcast %cst_18 : f32 to vector<1x32xf32>
    %28 = arith.maximumf %26, %27 : vector<1x32xf32>
    %cst_19 = arith.constant 9.99999974E-6 : f32
    %29 = vector.broadcast %cst_19 : f32 to vector<1x32xf32>
    %30 = arith.addf %28, %29 : vector<1x32xf32>
    %31 = math.rsqrt %30 : vector<1x32xf32>
    %32 = arith.mulf %31, %5 : vector<1x32xf32>
    %33 = arith.mulf %22, %32 : vector<1x32xf32>
    %34 = arith.subf %6, %33 : vector<1x32xf32>
    %35 = vector.broadcast %32 : vector<1x32xf32> to vector<8x32xf32>
    %36 = arith.mulf %15, %35 : vector<8x32xf32>
    %37 = vector.broadcast %34 : vector<1x32xf32> to vector<8x32xf32>
    %38 = arith.addf %36, %37 : vector<8x32xf32>
    %cst_20 = arith.constant dense<0.000000e+00> : vector<8x32xf32>
    %39 = tpu.matmul %38, %2, %cst_20 {dimension_numbers = #tpu.dot_dimension_numbers<[1], [0], [0], [1], [0, 0, 1, 1], [], []>} : vector<8x32xf32>, vector<32x32xf32>, vector<8x32xf32> -> vector<8x32xf32>
    %40 = vector.broadcast %7 : vector<1x32xf32> to vector<8x32xf32>
    %41 = arith.addf %39, %40 : vector<8x32xf32>
    %cst_21 = arith.constant 0.000000e+00 : f32
    %42 = vector.broadcast %cst_21 : f32 to vector<8x32xf32>
    %43 = arith.maximumf %41, %42 : vector<8x32xf32>
    %cst_22 = arith.constant dense<0.000000e+00> : vector<32xf32>
    %44 = vector.multi_reduction <add>, %43, %cst_22 [0] : vector<8x32xf32> to vector<32xf32>
    %45 = vector.shape_cast %44 : vector<32xf32> to vector<1x32xf32>
    %46 = arith.mulf %43, %43 : vector<8x32xf32>
    %cst_23 = arith.constant dense<0.000000e+00> : vector<32xf32>
    %47 = vector.multi_reduction <add>, %46, %cst_23 [0] : vector<8x32xf32> to vector<32xf32>
    %48 = vector.shape_cast %47 : vector<32xf32> to vector<1x32xf32>
    %cst_24 = arith.constant 1.250000e-01 : f32
    %49 = vector.broadcast %cst_24 : f32 to vector<1x32xf32>
    %50 = arith.mulf %45, %49 : vector<1x32xf32>
    %cst_25 = arith.constant 1.250000e-01 : f32
    %51 = vector.broadcast %cst_25 : f32 to vector<1x32xf32>
    %52 = arith.mulf %48, %51 : vector<1x32xf32>
    %53 = arith.mulf %50, %50 : vector<1x32xf32>
    %54 = arith.subf %52, %53 : vector<1x32xf32>
    %cst_26 = arith.constant 0.000000e+00 : f32
    %55 = vector.broadcast %cst_26 : f32 to vector<1x32xf32>
    %56 = arith.maximumf %54, %55 : vector<1x32xf32>
    %cst_27 = arith.constant 9.99999974E-6 : f32
    %57 = vector.broadcast %cst_27 : f32 to vector<1x32xf32>
    %58 = arith.addf %56, %57 : vector<1x32xf32>
    %59 = math.rsqrt %58 : vector<1x32xf32>
    %60 = arith.mulf %59, %8 : vector<1x32xf32>
    %61 = arith.mulf %50, %60 : vector<1x32xf32>
    %62 = arith.subf %9, %61 : vector<1x32xf32>
    %63 = vector.broadcast %60 : vector<1x32xf32> to vector<8x32xf32>
    %64 = arith.mulf %43, %63 : vector<8x32xf32>
    %65 = vector.broadcast %62 : vector<1x32xf32> to vector<8x32xf32>
    %66 = arith.addf %64, %65 : vector<8x32xf32>
    %cst_28 = arith.constant dense<0.000000e+00> : vector<8x1xf32>
    %67 = tpu.matmul %66, %3, %cst_28 {dimension_numbers = #tpu.dot_dimension_numbers<[1], [0], [0], [1], [0, 0, 1, 1], [], []>} : vector<8x32xf32>, vector<32x1xf32>, vector<8x1xf32> -> vector<8x1xf32>
    %68 = vector.broadcast %10 : vector<1x1xf32> to vector<8x1xf32>
    %69 = arith.addf %67, %68 : vector<8x1xf32>
    %cst_29 = arith.constant 2.000000e+01 : f32
    %70 = vector.broadcast %cst_29 : f32 to vector<8x1xf32>
    %71 = arith.cmpf ogt, %69, %70 : vector<8x1xf32>
    %cst_30 = arith.constant 2.000000e+01 : f32
    %72 = vector.broadcast %cst_30 : f32 to vector<8x1xf32>
    %73 = arith.minimumf %69, %72 : vector<8x1xf32>
    %74 = math.exp %73 : vector<8x1xf32>
    %75 = math.log1p %74 : vector<8x1xf32>
    %76 = arith.select %71, %69, %75 : vector<8x1xi1>, vector<8x1xf32>
    %c0_31 = arith.constant 0 : index
    %c0_32 = arith.constant 0 : index
    %77 = vector.load %arg3[%c0_31, %c0_32] : memref<8x1xf32, #tpu.memory_space<vmem>>, vector<8x1xf32>
    tpu.vector_store %arg3[%c0_31, %c0_32], %76 {strides = array<i32>} : memref<8x1xf32, #tpu.memory_space<vmem>>, vector<8x1xf32>,
    return
  }
}

</mosaic_0001>

<llo_original>
// kernel: dnn_poisson_forward.1
$region0: #{dnn_poisson_forward.1}
  #allocation0 [shape = 'u32[]', space=smem, size = 0x4, offset = 0x4, fixed_abs, tag = 'smem constant byte address 0x4 - core index']
  #allocation1 [shape = 'u32[144,128]{1,0:T(1,128)}', space=vmem, size = 0x12000, scoped, tag = 'internal scratch']
  %s0 = inlined_call_operand.vmem [shape: f32[8,18], index: 0, kind: input, shape index: {}]
  %s1 = inlined_call_operand.vmem [shape: f32[88,32], index: 1, kind: input, shape index: {}]
  %s2 = inlined_call_operand.vmem [shape: f32[8,32], index: 2, kind: input, shape index: {}]
  %s3 = inlined_call_operand.vmem [shape: f32[8,1], index: 3, kind: output, shape index: {}]
  %s4 = sld [smem:[#allocation0]]
  $region22: #{dnn_poisson_forward.1} parent=0
    _
  %s6 = ssub.s32 1, %s4
  %s7 = scalar_select 0, %s6, %s4
  // Predicated region
  $region2: #{dnn_poisson_forward.1} parent=0 // pred_check
    _
  $region3: #{dnn_poisson_forward.1} parent=0 // pred_check_branch
    %9 = sbr.rel (0) target = $region5
  $region4: #{dnn_poisson_forward.1} parent=0 // pred_region
    _
  $region5: #{dnn_poisson_forward.1} parent=0 // pred_fallthru
    _
  // Predicated region
  $region6: #{dnn_poisson_forward.1} parent=0 // pred_check
    _
  $region7: #{dnn_poisson_forward.1} parent=0 // pred_check_branch
    %11 = sbr.rel (0) target = $region9
  $region8: #{dnn_poisson_forward.1} parent=0 // pred_region
    _
  $region9: #{dnn_poisson_forward.1} parent=0 // pred_fallthru
    _
  // Predicated region
  $region10: #{dnn_poisson_forward.1} parent=0 // pred_check
    _
  $region11: #{dnn_poisson_forward.1} parent=0 // pred_check_branch
    %13 = sbr.rel (0) target = $region13
  $region12: #{dnn_poisson_forward.1} parent=0 // pred_region
    _
  $region13: #{dnn_poisson_forward.1} parent=0 // pred_fallthru
    _
  %v14 = vld [vmem:[%s0] sm:$0xff]
  %v15 = vld [vmem:[%s1] sm:$0xff]
  %v16 = vld [vmem:[%s1 + $0x8] sm:$0xff]
  %v17 = vld [vmem:[%s1 + $0x10] sm:$0x3]
  %v18 = vld [vmem:[%s1 + $0x18] sm:$0xff]
  %v19 = vld [vmem:[%s1 + $0x20] sm:$0xff]
  %v20 = vld [vmem:[%s1 + $0x28] sm:$0xff]
  %v21 = vld [vmem:[%s1 + $0x30] sm:$0xff]
  %v22 = vld [vmem:[%s1 + $0x38] sm:$0xff]
  %v23 = vld [vmem:[%s1 + $0x40] sm:$0xff]
  %v24 = vld [vmem:[%s1 + $0x48] sm:$0xff]
  %v25 = vld [vmem:[%s1 + $0x50] sm:$0xff]
  %v26 = vld [vmem:[%s2] sm:$0x1]
  %v27 = vld [vmem:[%s2 + $0x1] sm:$0x1]
  %v28 = vld [vmem:[%s2 + $0x2] sm:$0x1]
  %v29 = vld [vmem:[%s2 + $0x3] sm:$0x1]
  %v30 = vld [vmem:[%s2 + $0x4] sm:$0x1]
  %v31 = vld [vmem:[%s2 + $0x5] sm:$0x1]
  %v32 = vld [vmem:[%s2 + $0x6] sm:$0x1]
  %v33 = vlaneseq
  %v34 = vshrl.u32 %v33, 7
  %v35 = vsub.s32 0, %v34
  %v36 = vrot.slane %v26, %v35
  %vm37 = vcmask 146432
  %v39 = vsel %vm37, %v14, 0
  %vm41 = vcmask 1041408
  %v43 = vsel %vm41, %v17, 0
  %45 = vmatprep.subr.mxu0 0.0
  %46 = vmatpush1.msra.mxu0 %v15
  %47 = vmatprep.subr.mxu0 0.0
  %48 = vmatpush1.msra.mxu0 %v16
  %49 = vmatprep.subr.mxu0 0.0
  %50 = vmatpush1.msra.mxu0 %v43
  %51 = vmatprep.subr.mxu0 0.0
  %52 = vmatpush1.msra.mxu0 0.0
  %53 = vmatprep.subr.mxu0 0.0
  %54 = vmatpush1.msra.mxu0 0.0
  %55 = vmatprep.subr.mxu0 0.0
  %56 = vmatpush1.msra.mxu0 0.0
  %57 = vmatprep.subr.mxu0 0.0
  %58 = vmatpush1.msra.mxu0 0.0
  %59 = vmatprep.subr.mxu0 0.0
  %60 = vmatpush1.msra.mxu0 0.0
  %61 = vmatprep.subr.mxu0 0.0
  %62 = vmatpush1.msra.mxu0 0.0
  %63 = vmatprep.subr.mxu0 0.0
  %64 = vmatpush1.msra.mxu0 0.0
  %65 = vmatprep.subr.mxu0 0.0
  %66 = vmatpush1.msra.mxu0 0.0
  %67 = vmatprep.subr.mxu0 0.0
  %68 = vmatpush1.msra.mxu0 0.0
  %69 = vmatprep.subr.mxu0 0.0
  %70 = vmatpush1.msra.mxu0 0.0
  %71 = vmatprep.subr.mxu0 0.0
  %72 = vmatpush1.msra.mxu0 0.0
  %73 = vmatprep.subr.mxu0 0.0
  %74 = vmatpush1.msra.mxu0 0.0
  %75 = vmatprep.subr.mxu0 0.0
  %76 = vmatpush1.msra.mxu0 0.0
  %77 = vmatprep.subr.mxu0 0.0
  %78 = vmatpush1.msra.mxu0 0.0
  %79 = vmatprep.subr.mxu0 0.0
  %80 = vmatpush1.msra.mxu0 0.0
  %81 = vmatprep.subr.mxu0 0.0
  %82 = vmatpush1.msra.mxu0 0.0
  %83 = vmatprep.subr.mxu0 0.0
  %84 = vmatpush1.msra.mxu0 0.0
  %85 = vmatprep.subr.mxu0 0.0
  %86 = vmatpush1.msra.mxu0 0.0
  %87 = vmatprep.subr.mxu0 0.0
  %88 = vmatpush1.msra.mxu0 0.0
  %89 = vmatprep.subr.mxu0 0.0
  %90 = vmatpush1.msra.mxu0 0.0
  %91 = vmatprep.subr.mxu0 0.0
  %92 = vmatpush1.msra.mxu0 0.0
  %93 = vmatprep.subr.mxu0 0.0
  %94 = vmatpush1.msra.mxu0 0.0
  %95 = vmatprep.subr.mxu0 0.0
  %96 = vmatpush1.msra.mxu0 0.0
  %97 = vmatprep.subr.mxu0 0.0
  %98 = vmatpush1.msra.mxu0 0.0
  %99 = vmatprep.subr.mxu0 0.0
  %100 = vmatpush1.msra.mxu0 0.0
  %101 = vmatprep.subr.mxu0 0.0
  %102 = vmatpush1.msra.mxu0 0.0
  %103 = vmatprep.subr.mxu0 0.0
  %104 = vmatpush1.msra.mxu0 0.0
  %105 = vmatprep.subr.mxu0 0.0
  %106 = vmatpush1.msra.mxu0 0.0
  %107 = vmatprep.subr.mxu0 0.0
  %108 = vmatpush1.msra.mxu0 0.0
  %109 = vmatprep.mubr.f32.mxu0 0.0
  %110 = vmatmul.mubr.f32.gmra.mrb[0].mxu0 %v39
  %v111 = vpop.f32.mrb[0].mxu0
  %v112 = vadd.f32 %v36, %v111
  %v113 = vpop.f32.mrb[0].mxu0
  %114 = vdwg.mxu0
  %v115 = vmax.f32 %v112, 0.0
  %vm116 = vcmask 261120
  %v117 = vsel %vm116, %v115, 0.0
  %v118 = vrot.slane %v117, 4
  %v119 = vadd.f32 %v117, %v118
  %v120 = vrot.slane %v119, 2
  %v121 = vadd.f32 %v119, %v120
  %v122 = vrot.slane %v121, 1
  %v123 = vadd.f32 %v121, %v122
  %v124 = vmul.f32 %v115, %v115
  %v125 = vsel %vm116, %v124, 0.0
  %v126 = vrot.slane %v125, 4
  %v127 = vadd.f32 %v125, %v126
  %v128 = vrot.slane %v127, 2
  %v129 = vadd.f32 %v127, %v128
  %v130 = vrot.slane %v129, 1
  %v131 = vadd.f32 %v129, %v130
  %v132 = vmul.f32 %v123, 0.125
  %v133 = vmul.f32 %v131, 0.125
  %v134 = vmul.f32 %v132, %v132
  %v135 = vsub.f32 %v133, %v134
  %v136 = vmax.f32 %v135, 0.0
  %v137 = vadd.f32 %v136, 1e-05
  %v138 = vrsqrt.pop %v137
  %v139 = vmul.f32 %v138, %v27
  %v140 = vmul.f32 %v132, %v139
  %v141 = vsub.f32 %v28, %v140
  %v142 = vlaneseq
  %v143 = vshrl.u32 %v142, 7
  %v144 = vsub.s32 0, %v143
  %v145 = vrot.slane %v139, %v144
  %v146 = vmul.f32 %v115, %v145
  %v147 = vlaneseq
  %v148 = vshrl.u32 %v147, 7
  %v149 = vsub.s32 0, %v148
  %v150 = vrot.slane %v141, %v149
  %v151 = vadd.f32 %v146, %v150
  %v152 = vlaneseq
  %v153 = vshrl.u32 %v152, 7
  %v154 = vsub.s32 0, %v153
  %v155 = vrot.slane %v29, %v154
  %v157 = vsel %vm116, %v151, 0
  %159 = vmatprep.subr.mxu0 0.0
  %160 = vmatpush1.msra.mxu0 %v18
  %161 = vmatprep.subr.mxu0 0.0
  %162 = vmatpush1.msra.mxu0 %v19
  %163 = vmatprep.subr.mxu0 0.0
  %164 = vmatpush1.msra.mxu0 %v20
  %165 = vmatprep.subr.mxu0 0.0
  %166 = vmatpush1.msra.mxu0 %v21
  %167 = vmatprep.subr.mxu0 0.0
  %168 = vmatpush1.msra.mxu0 0.0
  %169 = vmatprep.subr.mxu0 0.0
  %170 = vmatpush1.msra.mxu0 0.0
  %171 = vmatprep.subr.mxu0 0.0
  %172 = vmatpush1.msra.mxu0 0.0
  %173 = vmatprep.subr.mxu0 0.0
  %174 = vmatpush1.msra.mxu0 0.0
  %175 = vmatprep.subr.mxu0 0.0
  %176 = vmatpush1.msra.mxu0 0.0
  %177 = vmatprep.subr.mxu0 0.0
  %178 = vmatpush1.msra.mxu0 0.0
  %179 = vmatprep.subr.mxu0 0.0
  %180 = vmatpush1.msra.mxu0 0.0
  %181 = vmatprep.subr.mxu0 0.0
  %182 = vmatpush1.msra.mxu0 0.0
  %183 = vmatprep.subr.mxu0 0.0
  %184 = vmatpush1.msra.mxu0 0.0
  %185 = vmatprep.subr.mxu0 0.0
  %186 = vmatpush1.msra.mxu0 0.0
  %187 = vmatprep.subr.mxu0 0.0
  %188 = vmatpush1.msra.mxu0 0.0
  %189 = vmatprep.subr.mxu0 0.0
  %190 = vmatpush1.msra.mxu0 0.0
  %191 = vmatprep.subr.mxu0 0.0
  %192 = vmatpush1.msra.mxu0 0.0
  %193 = vmatprep.subr.mxu0 0.0
  %194 = vmatpush1.msra.mxu0 0.0
  %195 = vmatprep.subr.mxu0 0.0
  %196 = vmatpush1.msra.mxu0 0.0
  %197 = vmatprep.subr.mxu0 0.0
  %198 = vmatpush1.msra.mxu0 0.0
  %199 = vmatprep.subr.mxu0 0.0
  %200 = vmatpush1.msra.mxu0 0.0
  %201 = vmatprep.subr.mxu0 0.0
  %202 = vmatpush1.msra.mxu0 0.0
  %203 = vmatprep.subr.mxu0 0.0
  %204 = vmatpush1.msra.mxu0 0.0
  %205 = vmatprep.subr.mxu0 0.0
  %206 = vmatpush1.msra.mxu0 0.0
  %207 = vmatprep.subr.mxu0 0.0
  %208 = vmatpush1.msra.mxu0 0.0
  %209 = vmatprep.subr.mxu0 0.0
  %210 = vmatpush1.msra.mxu0 0.0
  %211 = vmatprep.subr.mxu0 0.0
  %212 = vmatpush1.msra.mxu0 0.0
  %213 = vmatprep.subr.mxu0 0.0
  %214 = vmatpush1.msra.mxu0 0.0
  %215 = vmatprep.subr.mxu0 0.0
  %216 = vmatpush1.msra.mxu0 0.0
  %217 = vmatprep.subr.mxu0 0.0
  %218 = vmatpush1.msra.mxu0 0.0
  %219 = vmatprep.subr.mxu0 0.0
  %220 = vmatpush1.msra.mxu0 0.0
  %221 = vmatprep.subr.mxu0 0.0
  %222 = vmatpush1.msra.mxu0 0.0
  %223 = vmatprep.mubr.f32.mxu0 0.0
  %224 = vmatmul.mubr.f32.gmra.mrb[0].mxu0 %v157
  %v225 = vpop.f32.mrb[0].mxu0
  %v226 = vadd.f32 %v155, %v225
  %v227 = vpop.f32.mrb[0].mxu0
  %228 = vdwg.mxu0
  %v229 = vmax.f32 %v226, 0.0
  %v230 = vsel %vm116, %v229, 0.0
  %v231 = vrot.slane %v230, 4
  %v232 = vadd.f32 %v230, %v231
  %v233 = vrot.slane %v232, 2
  %v234 = vadd.f32 %v232, %v233
  %v235 = vrot.slane %v234, 1
  %v236 = vadd.f32 %v234, %v235
  %v237 = vmul.f32 %v229, %v229
  %v238 = vsel %vm116, %v237, 0.0
  %v239 = vrot.slane %v238, 4
  %v240 = vadd.f32 %v238, %v239
  %v241 = vrot.slane %v240, 2
  %v242 = vadd.f32 %v240, %v241
  %v243 = vrot.slane %v242, 1
  %v244 = vadd.f32 %v242, %v243
  %v245 = vmul.f32 %v236, 0.125
  %v246 = vmul.f32 %v244, 0.125
  %v247 = vmul.f32 %v245, %v245
  %v248 = vsub.f32 %v246, %v247
  %v249 = vmax.f32 %v248, 0.0
  %v250 = vadd.f32 %v249, 1e-05
  %v251 = vrsqrt.pop %v250
  %v252 = vmul.f32 %v251, %v30
  %v253 = vmul.f32 %v245, %v252
  %v254 = vsub.f32 %v31, %v253
  %v255 = vlaneseq
  %v256 = vshrl.u32 %v255, 7
  %v257 = vsub.s32 0, %v256
  %v258 = vrot.slane %v252, %v257
  %v259 = vmul.f32 %v229, %v258
  %v260 = vlaneseq
  %v261 = vshrl.u32 %v260, 7
  %v262 = vsub.s32 0, %v261
  %v263 = vrot.slane %v254, %v262
  %v264 = vadd.f32 %v259, %v263
  %v265 = vlaneseq
  %v266 = vshrl.u32 %v265, 7
  %v267 = vsub.s32 0, %v266
  %v268 = vrot.slane %v32, %v267
  %v270 = vsel %vm116, %v264, 0
  %272 = vmatprep.subr.mxu0 0.0
  %273 = vmatpush1.msra.mxu0 %v22
  %274 = vmatprep.subr.mxu0 0.0
  %275 = vmatpush1.msra.mxu0 %v23
  %276 = vmatprep.subr.mxu0 0.0
  %277 = vmatpush1.msra.mxu0 %v24
  %278 = vmatprep.subr.mxu0 0.0
  %279 = vmatpush1.msra.mxu0 %v25
  %280 = vmatprep.subr.mxu0 0.0
  %281 = vmatpush1.msra.mxu0 0.0
  %282 = vmatprep.subr.mxu0 0.0
  %283 = vmatpush1.msra.mxu0 0.0
  %284 = vmatprep.subr.mxu0 0.0
  %285 = vmatpush1.msra.mxu0 0.0
  %286 = vmatprep.subr.mxu0 0.0
  %287 = vmatpush1.msra.mxu0 0.0
  %288 = vmatprep.subr.mxu0 0.0
  %289 = vmatpush1.msra.mxu0 0.0
  %290 = vmatprep.subr.mxu0 0.0
  %291 = vmatpush1.msra.mxu0 0.0
  %292 = vmatprep.subr.mxu0 0.0
  %293 = vmatpush1.msra.mxu0 0.0
  %294 = vmatprep.subr.mxu0 0.0
  %295 = vmatpush1.msra.mxu0 0.0
  %296 = vmatprep.subr.mxu0 0.0
  %297 = vmatpush1.msra.mxu0 0.0
  %298 = vmatprep.subr.mxu0 0.0
  %299 = vmatpush1.msra.mxu0 0.0
  %300 = vmatprep.subr.mxu0 0.0
  %301 = vmatpush1.msra.mxu0 0.0
  %302 = vmatprep.subr.mxu0 0.0
  %303 = vmatpush1.msra.mxu0 0.0
  %304 = vmatprep.subr.mxu0 0.0
  %305 = vmatpush1.msra.mxu0 0.0
  %306 = vmatprep.subr.mxu0 0.0
  %307 = vmatpush1.msra.mxu0 0.0
  %308 = vmatprep.subr.mxu0 0.0
  %309 = vmatpush1.msra.mxu0 0.0
  %310 = vmatprep.subr.mxu0 0.0
  %311 = vmatpush1.msra.mxu0 0.0
  %312 = vmatprep.subr.mxu0 0.0
  %313 = vmatpush1.msra.mxu0 0.0
  %314 = vmatprep.subr.mxu0 0.0
  %315 = vmatpush1.msra.mxu0 0.0
  %316 = vmatprep.subr.mxu0 0.0
  %317 = vmatpush1.msra.mxu0 0.0
  %318 = vmatprep.subr.mxu0 0.0
  %319 = vmatpush1.msra.mxu0 0.0
  %320 = vmatprep.subr.mxu0 0.0
  %321 = vmatpush1.msra.mxu0 0.0
  %322 = vmatprep.subr.mxu0 0.0
  %323 = vmatpush1.msra.mxu0 0.0
  %324 = vmatprep.subr.mxu0 0.0
  %325 = vmatpush1.msra.mxu0 0.0
  %326 = vmatprep.subr.mxu0 0.0
  %327 = vmatpush1.msra.mxu0 0.0
  %328 = vmatprep.subr.mxu0 0.0
  %329 = vmatpush1.msra.mxu0 0.0
  %330 = vmatprep.subr.mxu0 0.0
  %331 = vmatpush1.msra.mxu0 0.0
  %332 = vmatprep.subr.mxu0 0.0
  %333 = vmatpush1.msra.mxu0 0.0
  %334 = vmatprep.subr.mxu0 0.0
  %335 = vmatpush1.msra.mxu0 0.0
  %336 = vmatprep.mubr.f32.mxu0 0.0
  %337 = vmatmul.mubr.f32.gmra.mrb[0].mxu0 %v270
  %v338 = vpop.f32.mrb[0].mxu0
  %v339 = vadd.f32 %v268, %v338
  %v340 = vpop.f32.mrb[0].mxu0
  %341 = vdwg.mxu0
  %vm342 = vcmp.gt.f32.partialorder %v339, 20.0
  %v343 = vmin.f32 %v339, 20.0
  %v344 = vmul.f32 %v343, 1.442695
  %v345 = vpow.pop %v344
  %v346 = vadd.f32 %v345, 1.0
  %v347 = vlog2.pop %v346
  %v348 = vmul.f32 %v347, 0.6931472
  %v349 = vmul.f32 -0.5, %v345
  %v350 = vadd.f32 %v349, 1.0
  %v351 = vmul.f32 %v350, %v345
  %v352 = vand.u32 2147483647, %v345
  %vm353 = vcmp.lt.f32.partialorder %v352, 0.0004427343
  %v354 = vsel %vm353, %v351, %v348
  %v355 = vsel %vm342, %v339, %v354
  %vm356 = vcmask 7168
  %357 = vst.msk [vmem:[%s3] sm:$0xff] %vm356, %v355
  // Predicated region
  $region14: #{dnn_poisson_forward.1} parent=0 // pred_check
    _
  $region15: #{dnn_poisson_forward.1} parent=0 // pred_check_branch
    %359 = sbr.rel (0) target = $region17
  $region16: #{dnn_poisson_forward.1} parent=0 // pred_region
    _
  $region17: #{dnn_poisson_forward.1} parent=0 // pred_fallthru
    _
  // Predicated region
  $region18: #{dnn_poisson_forward.1} parent=0 // pred_check
    _
  $region19: #{dnn_poisson_forward.1} parent=0 // pred_check_branch
    %361 = sbr.rel (0) target = $region21
  $region20: #{dnn_poisson_forward.1} parent=0 // pred_region
    _
  $region21: #{dnn_poisson_forward.1} parent=0 // pred_fallthru
    _

</llo_original>
